<compile_context>
chip_gen: v6e
topology: v6e:2x2x1
jax: 0.10.0
libtpu: 0.0.40
codegen_flags: <defaults>
</compile_context>

<pallas_src>
import functools

import jax
import jax.numpy as jnp
from jax.experimental import pallas as pl
from jax.experimental.pallas import tpu as pltpu


# ---------------------------------------------------------------------------
# helpers
# ---------------------------------------------------------------------------
def _round_up(x, m):
    return ((x + m - 1) // m) * m


def _vmem_budget_bytes():
    """Generation-aware VMEM budget: ~85% of physical VMEM.

    ~108 MiB on v5e/v6e (128 MiB), ~54 MiB on v7x (64 MiB).  Falls back to a
    conservative v7x-sized budget if the query is unavailable.
    """
    cap = None
    try:
        info = pltpu.get_tpu_info()
        cap = getattr(info, "vmem_capacity_bytes", None)
    except Exception:
        cap = None
    if not cap:
        cap = 64 << 20
    return int(cap * 0.85)


def _matmul_vmem_need(tm, tv, H):
    bpe = 2  # bf16
    return (2 * tm * H * bpe        # hidden tile (double buffered)
            + 2 * H * tv * bpe      # weight tile (double buffered, dominant stream)
            + 2 * tm * tv * bpe     # logits tile (double buffered)
            + tm * tv * 4           # f32 matmul accumulator temporary
            + (2 << 20))            # headroom

def _choose_tiles(M, H, V, budget, tile_m=None, tile_v=None):
    """Pick (tile_m, tile_v) for the lm_head matmul.

    Priority (per perf review): maximize tile_m first (weight re-stream factor
    is ceil(M/tile_m)), then tile_v (DMA row length / per-step overhead), all
    subject to the per-generation VMEM budget.
    """
    # vocab-tile candidates: multiples of 128 that divide V (lane-dense output,
    # unmasked vst); fall back to a single full-width tile for odd vocabs.
    if tile_v is not None:
        tv_opts = [tile_v]
    else:
        tv_opts = [tv for tv in range(128, min(V, 2048) + 1, 128) if V % tv == 0]
        if not tv_opts:
            tv_opts = [V]

    # m-tile candidates: a single tile covering all rows when M is small
    # (decode / short prefill -> weight streamed exactly once), else large
    # tiles; always a multiple of 16 (bf16 sublane packing).
    if tile_m is not None:
        tm_opts = [tile_m]
    elif M <= 1024:
        tm_opts = [_round_up(M, 16)]
    else:
        tm_opts = [1024, 512, 256, 128]

    min_tv = min(512, max(tv_opts))  # don't shrink tv below 512 just to grow tm
    for tm in tm_opts:
        for tv in sorted(tv_opts, reverse=True):
            if _matmul_vmem_need(tm, tv, H) <= budget and tv >= min_tv:
                return tm, tv
    # last resort: smallest tiles
    return tm_opts[-1], min(tv_opts)


# ---------------------------------------------------------------------------
# kernels
# ---------------------------------------------------------------------------
def _rmsnorm_kernel(x_ref, g_ref, o_ref, *, eps):
    # x_ref : (tn, H) bf16   hidden-state rows
    # g_ref : (1,  H) bf16   RMSNorm gamma
    # o_ref : (tn, H) bf16   normalized hidden states
    # HF LlamaRMSNorm semantics: f32 variance, f32 normalize, cast back to
    # bf16, then multiply by gamma.
    x = x_ref[...].astype(jnp.float32)
    var = jnp.mean(x * x, axis=-1, keepdims=True)
    xn = x * jax.lax.rsqrt(var + eps)
    o_ref[...] = xn.astype(jnp.bfloat16) * g_ref[...]


def _lmhead_kernel(h_ref, w_ref, o_ref):
    # h_ref : (tm, H)  bf16  normalized hidden tile (block constant across j)
    # w_ref : (H, tv)  bf16  lm_head weight tile (pre-transposed, lane-dense out)
    # o_ref : (tm, tv) bf16  logits tile
    o_ref[...] = jnp.dot(
        h_ref[...], w_ref[...], preferred_element_type=jnp.float32
    ).astype(o_ref.dtype)


# ---------------------------------------------------------------------------
# wrapper
# ---------------------------------------------------------------------------
def rmsnorm_lmhead(hidden_states, norm_weight, lm_head_weight_t, *, eps,
                   tile_m=None, tile_v=None):
    """hidden_states:    (B, S, H) bf16
       norm_weight:      (H,)      bf16
       lm_head_weight_t: (H, V)    bf16  (pre-transposed once at load time)
       returns logits    (B, S, V) bf16
    """
    B, S, H = hidden_states.shape
    H2, V = lm_head_weight_t.shape
    assert H2 == H
    M = B * S

    budget = _vmem_budget_bytes()
    tm, tv = _choose_tiles(M, H, V, budget, tile_m, tile_v)
    assert V % tv == 0, (V, tv)
    assert tv == V or tv % 128 == 0, tv

    M_pad = _round_up(M, tm)
    assert tm == M_pad or tm % 8 == 0, tm

    x2d = hidden_states.reshape(M, H)
    if M_pad != M:
        # zero rows normalize to zero (0 * finite rsqrt(eps)) and are sliced off.
        x2d = jnp.pad(x2d, ((0, M_pad - M), (0, 0)))
    g2d = norm_weight.reshape(1, H).astype(jnp.bfloat16)

    # --- pass 1: RMSNorm (tiny; keeps f32 intermediates bounded) ------------
    tn = 256 if tm % 256 == 0 else tm
    norm_need = 2 * (2 * tn * H * 2) + 3 * tn * H * 4 + (2 << 20)
    h2d = pl.pallas_call(
        functools.partial(_rmsnorm_kernel, eps=eps),
        out_shape=jax.ShapeDtypeStruct((M_pad, H), jnp.bfloat16),
        grid_spec=pltpu.PrefetchScalarGridSpec(
            num_scalar_prefetch=0,
            grid=(M_pad // tn,),
            in_specs=[
                pl.BlockSpec((tn, H), lambda i: (i, 0)),
                pl.BlockSpec((1, H), lambda i: (0, 0)),
            ],
            out_specs=pl.BlockSpec((tn, H), lambda i: (i, 0)),
        ),
        compiler_params=pltpu.CompilerParams(
            dimension_semantics=("parallel",),
            vmem_limit_bytes=int(min(norm_need, budget)),
        ),
        cost_estimate=pl.CostEstimate(
            flops=4 * M_pad * H,
            transcendentals=M_pad,                      # one rsqrt per row
            bytes_accessed=2 * (2 * M_pad * H + H),
        ),
    )(x2d, g2d)

    # --- pass 2: lm_head matmul (HBM weight-stream bound) --------------------
    n_m_tiles = M_pad // tm
    mm_need = _matmul_vmem_need(tm, tv, H)
    logits = pl.pallas_call(
        _lmhead_kernel,
        out_shape=jax.ShapeDtypeStruct((M_pad, V), jnp.bfloat16),
        grid_spec=pltpu.PrefetchScalarGridSpec(
            num_scalar_prefetch=0,
            grid=(n_m_tiles, V // tv),
            in_specs=[
                pl.BlockSpec((tm, H), lambda i, j: (i, 0)),   # hidden tile
                pl.BlockSpec((H, tv), lambda i, j: (0, j)),   # weight tile
            ],
            out_specs=pl.BlockSpec((tm, tv), lambda i, j: (i, j)),
        ),
        compiler_params=pltpu.CompilerParams(
            # No cross-step state: both axes independent.  On v7x the vocab
            # axis is sharded across the 2 TensorCores even for a single M
            # block (decode); on v5e/v6e (1 TC) this is equivalent to before.
            dimension_semantics=("parallel", "parallel"),
            vmem_limit_bytes=int(min(mm_need + (4 << 20), budget)),
        ),
        cost_estimate=pl.CostEstimate(
            flops=2 * M_pad * H * V,
            transcendentals=0,
            # true HBM traffic: hidden once, weight re-streamed per M tile,
            # logits once.
            bytes_accessed=2 * (M_pad * H + n_m_tiles * H * V + M_pad * V),
        ),
    )(h2d, lm_head_weight_t)

    if M_pad != M:
        logits = logits[:M]
    return logits.reshape(B, S, V)


# ---------------------------------------------------------------------------
# module wrapper
# ---------------------------------------------------------------------------
class MyLlamaForCausalLMPallas:
    """Holds deterministic bf16 params (embed_tokens / norm / lm_head)."""

    def __init__(self, vocab_size, hidden_size, rms_norm_eps=1e-6, key=None):
        self.vocab_size = vocab_size
        self.hidden_size = hidden_size
        self.eps = rms_norm_eps
        key = jax.random.PRNGKey(0) if key is None else key
        k_emb, k_head = jax.random.split(key, 2)
        self.embed_tokens = (
            jax.random.normal(k_emb, (vocab_size, hidden_size), jnp.float32) * 0.02
        ).astype(jnp.bfloat16)
        # PyTorch nn.Linear stores (V, H); keep ONLY the pre-transposed (H, V)
        # kernel layout so forward() never materializes a transposed copy and
        # the (V, H) duplicate doesn't waste HBM.
        lm_head_vh = (
            jax.random.normal(k_head, (vocab_size, hidden_size), jnp.float32) * 0.02
        ).astype(jnp.bfloat16)
        self.lm_head_weight_t = jnp.asarray(lm_head_vh.T)   # (H, V)
        del lm_head_vh
        self.norm_weight = jnp.ones((hidden_size,), jnp.bfloat16)

    def embed(self, input_ids):
        # glue: embedding lookup (done by `generate`, not the hot path)
        return jnp.take(self.embed_tokens, input_ids, axis=0)

    def forward(self, inputs_embeds, tile_m=None, tile_v=None):
        # TODO(synk): the pipeline-parallel RPC loop (self.server.post_sync per
        # pp stage) is pure communication / serialization with no Pallas
        # equivalent; hidden_states pass through unchanged here.
        hidden_states = inputs_embeds
        return rmsnorm_lmhead(
            hidden_states,
            self.norm_weight,
            self.lm_head_weight_t,
            eps=self.eps,
            tile_m=tile_m,
            tile_v=tile_v,
        )


# ---------------------------------------------------------------------------
# reference + test
# ---------------------------------------------------------------------------
def _reference(inputs_embeds, norm_weight, lm_head_weight_t, eps):
    x = inputs_embeds.astype(jnp.float32)
    var = jnp.mean(x * x, axis=-1, keepdims=True)
    xn = x * jax.lax.rsqrt(var + eps)
    h = xn.astype(jnp.bfloat16) * norm_weight
    return jnp.einsum(
        "bsh,hv->bsv", h, lm_head_weight_t, preferred_element_type=jnp.float32
    ).astype(jnp.bfloat16)


if __name__ == "__main__":
    # Small shapes; S chosen so M = B*S = 30 is NOT tile-aligned, exercising
    # the padding / slicing path.
    B, S, H, V = 2, 15, 128, 512

    model = MyLlamaForCausalLMPallas(vocab_size=V, hidden_size=H, rms_norm_eps=1e-6)
    # non-trivial gamma so the RMSNorm scale is actually exercised
    model.norm_weight = (
        1.0 + 0.1 * jax.random.normal(jax.random.PRNGKey(1), (H,), jnp.float32)
    ).astype(jnp.bfloat16)

    key = jax.random.PRNGKey(0)
    input_ids = jax.random.randint(key, (B, S), 0, V)
    inputs_embeds = model.embed(input_ids)  # (B, S, H) bf16

    ref = _reference(inputs_embeds, model.norm_weight, model.lm_head_weight_t,
                     model.eps)

    # 1) auto tiling (single M block, single V block at these shapes)
    logits_auto = jax.block_until_ready(model.forward(inputs_embeds))
    # 2) forced small tiles to exercise both grid axes + M padding
    logits_tiled = jax.block_until_ready(
        model.forward(inputs_embeds, tile_m=16, tile_v=128))

    for logits in (logits_auto, logits_tiled):
        assert logits.shape == (B, S, V), logits.shape
        assert logits.dtype == jnp.bfloat16
        err = jnp.max(jnp.abs(logits.astype(jnp.float32) - ref.astype(jnp.float32)))
        assert float(err) < 1e-2, float(err)

    print("KERNEL_OK")
</pallas_src>

<mosaic_0001>
module attributes {stable_mosaic.version = 11 : i64} {
  func.func @_rmsnorm_kernel(%arg0: i32, %arg1: memref<32x128xbf16, #tpu.memory_space<vmem>>, %arg2: memref<1x128xbf16, #tpu.memory_space<vmem>>, %arg3: memref<32x128xbf16, #tpu.memory_space<vmem>>) attributes {dimension_semantics = [#tpu.dimension_semantics<parallel>], iteration_bounds = array<i64: 1>, scalar_prefetch = 0 : i64, scratch_operands = 0 : i64, tpu.core_type = #tpu.core_type<tc>, window_params = [{transform_indices = @transform_0, window_bounds = array<i64: 32, 128>}, {pipeline_mode = #tpu.pipeline_mode<synchronous>, transform_indices = @transform_1, window_bounds = array<i64: 1, 128>}, {transform_indices = @transform_2, window_bounds = array<i64: 32, 128>}]} {
    %c0 = arith.constant 0 : index
    %c0_0 = arith.constant 0 : index
    %0 = vector.load %arg1[%c0, %c0_0] : memref<32x128xbf16, #tpu.memory_space<vmem>>, vector<32x128xbf16>
    %1 = arith.extf %0 : vector<32x128xbf16> to vector<32x128xf32>
    %2 = arith.mulf %1, %1 : vector<32x128xf32>
    %cst = arith.constant dense<0.000000e+00> : vector<32xf32>
    %3 = vector.multi_reduction <add>, %2, %cst [1] : vector<32x128xf32> to vector<32xf32>
    %4 = vector.shape_cast %3 : vector<32xf32> to vector<32x1xf32>
    %cst_1 = arith.constant 1.280000e+02 : f32
    %5 = vector.broadcast %cst_1 : f32 to vector<32x1xf32>
    %6 = arith.divf %4, %5 : vector<32x1xf32>
    %cst_2 = arith.constant 9.99999997E-7 : f32
    %7 = vector.broadcast %cst_2 : f32 to vector<32x1xf32>
    %8 = arith.addf %6, %7 : vector<32x1xf32>
    %9 = math.rsqrt %8 : vector<32x1xf32>
    %10 = vector.broadcast %9 : vector<32x1xf32> to vector<32x128xf32>
    %11 = arith.mulf %1, %10 : vector<32x128xf32>
    %12 = arith.truncf %11 : vector<32x128xf32> to vector<32x128xbf16>
    %c0_3 = arith.constant 0 : index
    %c0_4 = arith.constant 0 : index
    %13 = vector.load %arg2[%c0_3, %c0_4] : memref<1x128xbf16, #tpu.memory_space<vmem>>, vector<1x128xbf16>
    %14 = vector.broadcast %13 : vector<1x128xbf16> to vector<32x128xbf16>
    %15 = arith.mulf %12, %14 : vector<32x128xbf16>
    %c0_5 = arith.constant 0 : index
    %c0_6 = arith.constant 0 : index
    %16 = vector.load %arg3[%c0_5, %c0_6] : memref<32x128xbf16, #tpu.memory_space<vmem>>, vector<32x128xbf16>
    tpu.vector_store %arg3[%c0_5, %c0_6], %15 {strides = array<i32>} : memref<32x128xbf16, #tpu.memory_space<vmem>>, vector<32x128xbf16>,
    return
  }
  func.func @transform_0(%arg0: i32) -> (i32, i32) {
    %c0_i32 = arith.constant 0 : i32
    %c0_i32_0 = arith.constant 0 : i32
    return %arg0, %c0_i32 : i32, i32
  }
  func.func @transform_1(%arg0: i32) -> (i32, i32) {
    %c0_i32 = arith.constant 0 : i32
    %c0_i32_0 = arith.constant 0 : i32
    %c0_i32_1 = arith.constant 0 : i32
    return %c0_i32, %c0_i32_0 : i32, i32
  }
  func.func @transform_2(%arg0: i32) -> (i32, i32) {
    %c0_i32 = arith.constant 0 : i32
    %c0_i32_0 = arith.constant 0 : i32
    return %arg0, %c0_i32 : i32, i32
  }
}

</mosaic_0001>

<llo_original>
// kernel: tpu_custom_call.1
$region0: #{tpu_custom_call.1}
  #allocation0 [shape = 'u32[]', space=smem, size = 0x4, offset = 0x4, fixed_abs, tag = 'smem constant byte address 0x4 - core index']
  #allocation1 [shape = 'u32[144,128]{1,0:T(1,128)}', space=vmem, size = 0x12000, scoped, tag = 'internal scratch']
  %s0 = inlined_call_operand.hbm [shape: bf16[32,128], index: 0, kind: input, shape index: {}]
  %s1 = inlined_call_operand.vmem [shape: bf16[1,128], index: 1, kind: input, shape index: {}]
  %s2 = inlined_call_operand.hbm [shape: bf16[32,128], index: 2, kind: output, shape index: {}]
  %s3 = sld [smem:[#allocation0]]
  $region22: #{tpu_custom_call.1} parent=0
    _
  %s5 = ssub.s32 1, %s3
  %s6 = scalar_select 0, %s5, %s3
  $region1: #{tpu_custom_call.1} parent=0
    #allocation2 [shape = 'u8[8192]{0}', space=vmem, size = 0x2000, scoped, tag = 'input window, operand 0, single buffered']
    #allocation3 [shape = 's32[1]{0}', space=sflag, size = 0x4, scoped, tag = 'scoped memory for tpu_custom_call.1']
    #allocation4 [shape = 's32[1]{0}', space=sflag, size = 0x4, scoped, tag = 'scoped memory for tpu_custom_call.1']
    #allocation5 [shape = 'u8[8192]{0}', space=vmem, size = 0x2000, scoped, tag = 'output window, operand 0, single buffered']
    %7 = vsyncpa [#allocation3], 0
    %8 = vsyncpa [#allocation4], 0
    // Predicated region
    $region2: #{tpu_custom_call.1} parent=1 // pred_check
      _
    $region3: #{tpu_custom_call.1} parent=1 // pred_check_branch
      %10 = sbr.rel (0) target = $region5
    $region4: #{tpu_custom_call.1} parent=1 // pred_region
      %s12 = ssub.s32 256, 256
      %13 = vsyncadd [#allocation3], %s12
      %s14 = sshll.u32 [#allocation2], 4
      %s15 = int_to_ptr.vmem [resolvable:$true] %s14
      %20 = dma.hbm_to_vmem [thread:$0]  %s0, 256, %s15, [#allocation3], 64, 64, 4
    $region5: #{tpu_custom_call.1} parent=1 // pred_fallthru
      _
    // Predicated region
    $region6: #{tpu_custom_call.1} parent=1 // pred_check
      _
    $region7: #{tpu_custom_call.1} parent=1 // pred_check_branch
      %22 = sbr.rel (0) target = $region9
    $region8: #{tpu_custom_call.1} parent=1 // pred_region
      _
    $region9: #{tpu_custom_call.1} parent=1 // pred_fallthru
      _
    // Predicated region
    $region10: #{tpu_custom_call.1} parent=1 // pred_check
      _
    $region11: #{tpu_custom_call.1} parent=1 // pred_check_branch
      %24 = sbr.rel (0) target = $region13
    $region12: #{tpu_custom_call.1} parent=1 // pred_region
      %25 = dma.done [#allocation3], 256
    $region13: #{tpu_custom_call.1} parent=1 // pred_fallthru
      _
    %v26 = vld [vmem:[#allocation2] sm:$0xf]
    %v27 = vld [vmem:[#allocation2 + $0x4] sm:$0xf]
    %v28 = vld [vmem:[#allocation2 + $0x8] sm:$0xf]
    %v29 = vld [vmem:[#allocation2 + $0xc] sm:$0xf]
    %v30 = vunpack.c.l.bf16 %v26
    %v31 = vunpack.c.l.bf16 %v27
    %v32 = vunpack.c.l.bf16 %v28
    %v33 = vunpack.c.l.bf16 %v29
    %v34 = vmul.f32 %v30, %v30
    %v35 = vmul.f32 %v31, %v31
    %v36 = vmul.f32 %v32, %v32
    %v37 = vmul.f32 %v33, %v33
    %38 = vadd.xlane.f32.xlu0 %v34
    %v39 = vpop.xlane.xlu0 %38
    %40 = vadd.xlane.f32.xlu0 %v35
    %v41 = vpop.xlane.xlu0 %40
    %42 = vadd.xlane.f32.xlu0 %v36
    %v43 = vpop.xlane.xlu0 %42
    %44 = vadd.xlane.f32.xlu0 %v37
    %v45 = vpop.xlane.xlu0 %44
    %v46 = vrcp.pop 128.0
    %v47 = vmul.f32 %v39, %v46
    %v48 = vmul.f32 %v41, %v46
    %v49 = vmul.f32 %v43, %v46
    %v50 = vmul.f32 %v45, %v46
    %v51 = vadd.f32 %v47, 1e-06
    %v52 = vadd.f32 %v48, 1e-06
    %v53 = vadd.f32 %v49, 1e-06
    %v54 = vadd.f32 %v50, 1e-06
    %v55 = vrsqrt.pop %v51
    %v56 = vrsqrt.pop %v52
    %v57 = vrsqrt.pop %v53
    %v58 = vrsqrt.pop %v54
    %v59 = vmul.f32 %v30, %v55
    %v60 = vmul.f32 %v31, %v56
    %v61 = vmul.f32 %v32, %v57
    %v62 = vmul.f32 %v33, %v58
    %v63 = vpack.c.bf16 %v60, %v59
    %v64 = vpack.c.bf16 %v62, %v61
    %v65 = vld [vmem:[%s1] sm:$0x1]
    %v67 = vpack.i.b16 %v65, %v65
    %v69 = vlaneseq
    %v70 = vshrl.u32 %v69, 7
    %v71 = vsub.s32 0, %v70
    %v72 = vrot.slane %v67, %v71
    %v73 = vmul.bf16 %v63, %v72
    %v74 = vmul.bf16 %v64, %v72
    %v77 = vunpack.c.l.b16 %v73
    %v78 = vunpack.c.h.b16 %v73
    %v79 = vunpack.c.l.b16 %v74
    %v80 = vunpack.c.h.b16 %v74
    %v81 = vpack.c.b16 %v77, %v77
    %v82 = vpack.c.b16 %v78, %v78
    %v83 = vpack.c.b16 %v79, %v79
    %v84 = vpack.c.b16 %v80, %v80
    %89 = vst [vmem:[#allocation5] sm:$0xf] %v81
    %90 = vst [vmem:[#allocation5 + $0x4] sm:$0xf] %v82
    %91 = vst [vmem:[#allocation5 + $0x8] sm:$0xf] %v83
    %92 = vst [vmem:[#allocation5 + $0xc] sm:$0xf] %v84
    // Predicated region
    $region14: #{tpu_custom_call.1} parent=1 // pred_check
      _
    $region15: #{tpu_custom_call.1} parent=1 // pred_check_branch
      %94 = sbr.rel (0) target = $region17
    $region16: #{tpu_custom_call.1} parent=1 // pred_region
      %s96 = ssub.s32 256, 256
      %97 = vsyncadd [#allocation4], %s96
      %s98 = sshll.u32 [#allocation5], 4
      %s99 = int_to_ptr.vmem [resolvable:$true] %s98
      %104 = dma.vmem_to_hbm [thread:$0]  %s99, 256, %s2, [#allocation4], 64, 64, 4
    $region17: #{tpu_custom_call.1} parent=1 // pred_fallthru
      _
    // Predicated region
    $region18: #{tpu_custom_call.1} parent=1 // pred_check
      _
    $region19: #{tpu_custom_call.1} parent=1 // pred_check_branch
      %106 = sbr.rel (0) target = $region21
    $region20: #{tpu_custom_call.1} parent=1 // pred_region
      %107 = dma.done [#allocation4], 256
    $region21: #{tpu_custom_call.1} parent=1 // pred_fallthru
      _
    %108 = vsyncpa [#allocation3], 1
    %109 = vsyncpa [#allocation4], 1

</llo_original>
